<compile_context>
chip_gen: v5e
topology: v5e:2x2
jax: 0.10.0
libtpu: 0.0.40
codegen_flags: <defaults>
</compile_context>

<pallas_src>
import jax
import jax.numpy as jnp
from jax import lax
from jax.experimental import pallas as pl
from jax.experimental.pallas import tpu as pltpu

EPS = 1e-10

_DEFAULT_BLOCK_BYTES = 4 << 20     # ~4 MiB streamed block per grid step
_F32_CHUNK_BYTES = 512 * 1024      # per inner-step f32 working set (~128 vregs/op)
_MIN_PALLAS_BYTES = 64 * 1024      # below this the XLA-fused reference wins


def l2norm_ref(x):
    """Pure-JAX reference mirroring the PyTorch forward exactly."""
    norm = jnp.sqrt(jnp.sum(x * x, axis=1) + EPS)
    return x / norm[:, None]


def _device_info():
    """(tensorcores_per_device, physical_vmem_bytes); conservative fallbacks."""
    vmem = 64 << 20                 # v7x per-core VMEM — smallest in the fleet
    cores = 1
    try:
        vmem = int(pltpu.get_tpu_info().vmem_capacity_bytes)
    except Exception:
        pass
    try:
        kind = jax.devices()[0].device_kind.lower()
        if "v7" in kind or "7x" in kind:
            cores = 2               # v7x: 2 TensorCores share the parallel axis
    except Exception:
        pass
    return cores, vmem


def _round_down(x, m):
    return max(m, (x // m) * m)


def _make_kernel(d, chunk_rows, n_chunks, use_mxu):
    """Kernel over one (block_rows, d) tile, processed in row chunks."""

    def kernel(x_ref, o_ref):
        # (d, 1) ones column: row-wise sum-of-squares as an MXU matmul, keeping
        # the XLU free for the lane broadcast (review item: avoid XLU-bound on
        # v7x once DMA is fast).  Hoisted outside the chunk loop.
        ones_col = jnp.ones((d, 1), jnp.float32) if use_mxu else None

        def process(c, carry):
            i = c * chunk_rows
            if not isinstance(i, int):
                i = pl.multiple_of(i, chunk_rows)         # aligned dyn-slice hint
            x = x_ref[pl.ds(i, chunk_rows), :].astype(jnp.float32)
            xsq = x * x                                   # VPU
            if use_mxu:
                ss = jnp.dot(xsq, ones_col,               # MXU row reduce
                             preferred_element_type=jnp.float32)
            else:
                ss = jnp.sum(xsq, axis=1, keepdims=True)  # XLU lane reduce
            inv = lax.rsqrt(ss + EPS)                     # EUP
            # Multiply in f32, cast once (matches torch's f32 divide).
            o_ref[pl.ds(i, chunk_rows), :] = (x * inv).astype(o_ref.dtype)
            return carry

        if n_chunks == 1:
            process(0, 0)                                 # fully static slices
        else:
            lax.fori_loop(0, n_chunks, process, 0)

    return kernel


def l2norm(x, *, block_bytes=_DEFAULT_BLOCK_BYTES, force_pallas=False):
    """L2-normalize each row of (N, D): x / sqrt(sum(x*x, axis=1) + eps)."""
    orig_n, d = x.shape
    itemsize = jnp.dtype(x.dtype).itemsize
    total_bytes = orig_n * d * itemsize

    # Tiny inputs: launch + per-step overhead dominates; XLA-fused path wins.
    if not force_pallas and total_bytes < _MIN_PALLAS_BYTES:
        return l2norm_ref(x)

    cores, vmem_cap = _device_info()
    sub = {4: 8, 2: 16, 1: 32}.get(itemsize, 8)   # sublane packing per dtype

    n = orig_n
    if n < sub:  # degenerate tiny N (only reachable via force_pallas)
        x = jnp.pad(x, ((0, sub - n), (0, 0)))
        n = sub

    # --- block / chunk sizing ------------------------------------------------
    # Target ~4 MiB per streamed block, capped so double-buffered in+out plus
    # f32 temps stay comfortably inside the smallest scoped-VMEM budget.
    row_bytes = d * itemsize
    max_block_bytes = max(256 * 1024, (vmem_cap // 2 - (4 << 20)) // 4)
    blk_bytes = min(block_bytes, max_block_bytes)

    n_rounded = pl.cdiv(n, sub) * sub
    block_rows = min(_round_down(blk_bytes // row_bytes, sub), n_rounded)

    # Inner chunking bounds the per-step f32 working set regardless of how
    # large the DMA block is.
    chunk_rows = min(_round_down(_F32_CHUNK_BYTES // (d * 4), sub), block_rows)
    block_rows = _round_down(block_rows, chunk_rows)

    # v7x (2 TensorCores): give the parallel grid axis at least one block per
    # core for mid/large inputs.  Gated on each half still being >= ~1 MiB so
    # the extra grid step is noise; never applied on 1-TC chips.
    if (cores >= 2 and pl.cdiv(n, block_rows) < cores
            and block_rows * row_bytes >= (2 << 20)):
        block_rows = _round_down(block_rows // cores, chunk_rows)

    n_chunks = block_rows // chunk_rows
    # No padding / output slice: rows are independent, so Pallas's masked
    # boundary block (garbage rows read, OOB rows never written back) is safe
    # and avoids the extra HBM round-trips of jnp.pad + out[:n].
    grid = (pl.cdiv(n, block_rows),)

    # VMEM: double-buffered in + out blocks, per-chunk f32 temps, headroom.
    vmem_bytes = 4 * block_rows * row_bytes + 4 * chunk_rows * d * 4 + (2 << 20)
    vmem_bytes = int(max(2 << 20, min(vmem_bytes, vmem_cap - (4 << 20))))

    cost = pl.CostEstimate(
        flops=int(3 * n * d),                 # square, reduce-add, scale
        transcendentals=int(n),               # one rsqrt per row
        bytes_accessed=int(2 * n * d * itemsize),
    )

    use_mxu = (d % 128 == 0)                  # lane-aligned feature dim → MXU reduce
    kernel = _make_kernel(d, chunk_rows, n_chunks, use_mxu)

    out = pl.pallas_call(
        kernel,
        out_shape=jax.ShapeDtypeStruct((n, d), x.dtype),
        grid_spec=pltpu.PrefetchScalarGridSpec(
            num_scalar_prefetch=0,
            grid=grid,
            in_specs=[pl.BlockSpec((block_rows, d), lambda i: (i, 0))],
            out_specs=pl.BlockSpec((block_rows, d), lambda i: (i, 0)),
        ),
        compiler_params=pltpu.CompilerParams(
            dimension_semantics=("parallel",),
            vmem_limit_bytes=vmem_bytes,
        ),
        cost_estimate=cost,
    )(x)
    return out if n == orig_n else out[:orig_n]


if __name__ == "__main__":
    key = jax.random.PRNGKey(0)

    # HardNet descriptors: batch of N descriptors, D=128 feature dim.
    N, D = 16, 128
    x = jax.random.normal(key, (N, D), dtype=jnp.float32)

    out = l2norm(x, force_pallas=True)        # exercise the Pallas path
    jax.block_until_ready(out)
    ref = l2norm_ref(x)
    assert out.shape == x.shape and out.dtype == x.dtype
    assert jnp.allclose(out, ref, atol=1e-6, rtol=1e-6), "mismatch vs reference"

    # Ragged N with a multi-block grid and a masked partial boundary block
    # (small block_bytes forces several grid steps at this small shape).
    N2 = 1000
    x2 = jax.random.normal(jax.random.PRNGKey(1), (N2, D), dtype=jnp.float32)
    out2 = l2norm(x2, block_bytes=128 * 1024)
    jax.block_until_ready(out2)
    assert jnp.allclose(out2, l2norm_ref(x2), atol=1e-6, rtol=1e-6)

    # Tiny-input bypass (pure-JAX path) agrees too.
    out3 = l2norm(x)
    assert jnp.allclose(out3, ref, atol=1e-6, rtol=1e-6)

    print("KERNEL_OK")
</pallas_src>

<mosaic_0001>
module attributes {stable_mosaic.version = 11 : i64} {
  func.func @kernel(%arg0: i32, %arg1: memref<16x128xf32, #tpu.memory_space<vmem>>, %arg2: memref<16x128xf32, #tpu.memory_space<vmem>>) attributes {dimension_semantics = [#tpu.dimension_semantics<parallel>], iteration_bounds = array<i64: 1>, scalar_prefetch = 0 : i64, scratch_operands = 0 : i64, tpu.core_type = #tpu.core_type<tc>, window_params = [{transform_indices = @transform_0, window_bounds = array<i64: 16, 128>}, {transform_indices = @transform_1, window_bounds = array<i64: 16, 128>}]} {
    %cst = arith.constant 1.000000e+00 : f32
    %0 = vector.broadcast %cst : f32 to vector<128x1xf32>
    %c0 = arith.constant 0 : index
    %c0_0 = arith.constant 0 : index
    %1 = vector.load %arg1[%c0, %c0_0] : memref<16x128xf32, #tpu.memory_space<vmem>>, vector<16x128xf32>
    %2 = arith.mulf %1, %1 : vector<16x128xf32>
    %cst_1 = arith.constant dense<0.000000e+00> : vector<16x1xf32>
    %3 = tpu.matmul %2, %0, %cst_1 {dimension_numbers = #tpu.dot_dimension_numbers<[1], [0], [0], [1], [0, 0, 1, 1], [], []>} : vector<16x128xf32>, vector<128x1xf32>, vector<16x1xf32> -> vector<16x1xf32>
    %cst_2 = arith.constant 1.000000e-10 : f32
    %4 = vector.broadcast %cst_2 : f32 to vector<16x1xf32>
    %5 = arith.addf %3, %4 : vector<16x1xf32>
    %6 = math.rsqrt %5 : vector<16x1xf32>
    %7 = vector.broadcast %6 : vector<16x1xf32> to vector<16x128xf32>
    %8 = arith.mulf %1, %7 : vector<16x128xf32>
    %c0_3 = arith.constant 0 : index
    %c0_4 = arith.constant 0 : index
    %9 = vector.load %arg2[%c0_3, %c0_4] : memref<16x128xf32, #tpu.memory_space<vmem>>, vector<16x128xf32>
    tpu.vector_store %arg2[%c0_3, %c0_4], %8 {strides = array<i32>} : memref<16x128xf32, #tpu.memory_space<vmem>>, vector<16x128xf32>,
    return
  }
  func.func @transform_0(%arg0: i32) -> (i32, i32) {
    %c0_i32 = arith.constant 0 : i32
    %c0_i32_0 = arith.constant 0 : i32
    return %arg0, %c0_i32 : i32, i32
  }
  func.func @transform_1(%arg0: i32) -> (i32, i32) {
    %c0_i32 = arith.constant 0 : i32
    %c0_i32_0 = arith.constant 0 : i32
    return %arg0, %c0_i32 : i32, i32
  }
}

</mosaic_0001>

<llo_original>
// kernel: tpu_custom_call.1
$region0: #{tpu_custom_call.1}
  #allocation0 [shape = 'u32[]', space=smem, size = 0x4, offset = 0x4, fixed_abs, tag = 'smem constant byte address 0x4 - core index']
  #allocation1 [shape = 'u32[72,128]{1,0:T(1,128)}', space=vmem, size = 0x9000, scoped, tag = 'internal scratch']
  %s0 = inlined_call_operand.hbm [shape: f32[16,128], index: 0, kind: input, shape index: {}]
  %s1 = inlined_call_operand.hbm [shape: f32[16,128], index: 1, kind: output, shape index: {}]
  %s2 = sld [smem:[#allocation0]]
  $region18: #{tpu_custom_call.1} parent=0
    _
  %s4 = ssub.s32 1, %s2
  %s5 = scalar_select 0, %s4, %s2
  $region1: #{tpu_custom_call.1} parent=0
    #allocation2 [shape = 'u8[8192]{0}', space=vmem, size = 0x2000, scoped, tag = 'input window, operand 0, single buffered']
    #allocation3 [shape = 's32[1]{0}', space=sflag, size = 0x4, scoped, tag = 'scoped memory for tpu_custom_call.1']
    #allocation4 [shape = 's32[1]{0}', space=sflag, size = 0x4, scoped, tag = 'scoped memory for tpu_custom_call.1']
    #allocation5 [shape = 'u8[8192]{0}', space=vmem, size = 0x2000, scoped, tag = 'output window, operand 0, single buffered']
    %6 = vsyncpa [#allocation3], 0
    %7 = vsyncpa [#allocation4], 0
    // Predicated region
    $region2: #{tpu_custom_call.1} parent=1 // pred_check
      _
    $region3: #{tpu_custom_call.1} parent=1 // pred_check_branch
      %9 = sbr.rel (0) target = $region5
    $region4: #{tpu_custom_call.1} parent=1 // pred_region
      %11 = vsyncadd [#allocation3], 0
      %s12 = sshll.u32 %s0, 4
      %s13 = int_to_ptr.hbm [resolvable:$true] %s12
      %s14 = sshll.u32 [#allocation2], 4
      %s15 = int_to_ptr.vmem [resolvable:$true] %s14
      %20 = dma.hbm_to_vmem [thread:$0]  %s13, 256, %s15, [#allocation3], 128, 128, 8
    $region5: #{tpu_custom_call.1} parent=1 // pred_fallthru
      _
    // Predicated region
    $region6: #{tpu_custom_call.1} parent=1 // pred_check
      _
    $region7: #{tpu_custom_call.1} parent=1 // pred_check_branch
      %22 = sbr.rel (0) target = $region9
    $region8: #{tpu_custom_call.1} parent=1 // pred_region
      %24 = dma.done [#allocation3], 256
    $region9: #{tpu_custom_call.1} parent=1 // pred_fallthru
      _
    %v25 = vld [vmem:[#allocation2] sm:$0xff]
    %v26 = vld [vmem:[#allocation2 + $0x8] sm:$0xff]
    %v27 = vmul.f32 %v25, %v25
    %v28 = vmul.f32 %v26, %v26
    %29 = vmatpush.msra.mxu0 1.0
    %30 = vmatpush.msra.mxu0 1.0
    %31 = vmatpush.msra.mxu0 1.0
    %32 = vmatpush.msra.mxu0 1.0
    %33 = vmatpush.msra.mxu0 1.0
    %34 = vmatpush.msra.mxu0 1.0
    %35 = vmatpush.msra.mxu0 1.0
    %36 = vmatpush.msra.mxu0 1.0
    %37 = vmatpush.msra.mxu0 1.0
    %38 = vmatpush.msra.mxu0 1.0
    %39 = vmatpush.msra.mxu0 1.0
    %40 = vmatpush.msra.mxu0 1.0
    %41 = vmatpush.msra.mxu0 1.0
    %42 = vmatpush.msra.mxu0 1.0
    %43 = vmatpush.msra.mxu0 1.0
    %44 = vmatpush.msra.mxu0 1.0
    %45 = vmatmul.f32.gmra.mxu0 %v27
    %v46 = vpop.f32.mrf.mxu0
    %v47 = vadd.f32 1e-10, %v46
    %48 = vmatmul.f32.gmra.mxu0 %v28
    %v49 = vpop.f32.mrf.mxu0
    %v50 = vadd.f32 1e-10, %v49
    %51 = vdwg.mxu0
    %v52 = vrsqrt.pop %v47
    %v53 = vmul.f32 %v52, %v47
    %v54 = vmul.f32 %v53, %v52
    %v55 = vmul.f32 0.5, %v54
    %v56 = vsub.f32 1.5, %v55
    %v57 = vmul.f32 %v52, %v56
    %vm58 = vweird.f32 %v47
    %vm59 = vweird.f32 %v52
    %vm60 = vmor %vm58, %vm59
    %v61 = vsel %vm60, %v52, %v57
    %v62 = vrsqrt.pop %v50
    %v63 = vmul.f32 %v62, %v50
    %v64 = vmul.f32 %v63, %v62
    %v65 = vmul.f32 0.5, %v64
    %v66 = vsub.f32 1.5, %v65
    %v67 = vmul.f32 %v62, %v66
    %vm68 = vweird.f32 %v50
    %vm69 = vweird.f32 %v62
    %vm70 = vmor %vm68, %vm69
    %v71 = vsel %vm70, %v62, %v67
    %73 = vset.pattern.permute.xlu0 0
    %74 = vperm.xlu0 %73, %v61
    %v75 = vpop.permute.xlu0 %74
    %78 = vset.pattern.permute.xlu0 0
    %79 = vperm.xlu0 %78, %v71
    %v80 = vpop.permute.xlu0 %79
    %v82 = vmul.f32 %v25, %v75
    %v83 = vmul.f32 %v26, %v80
    %84 = vst [vmem:[#allocation5] sm:$0xff] %v82
    %85 = vst [vmem:[#allocation5 + $0x8] sm:$0xff] %v83
    // Predicated region
    $region10: #{tpu_custom_call.1} parent=1 // pred_check
      _
    $region11: #{tpu_custom_call.1} parent=1 // pred_check_branch
      %87 = sbr.rel (0) target = $region13
    $region12: #{tpu_custom_call.1} parent=1 // pred_region
      %89 = vsyncadd [#allocation4], 0
      %s90 = sshll.u32 [#allocation5], 4
      %s91 = int_to_ptr.vmem [resolvable:$true] %s90
      %s92 = sshll.u32 %s1, 4
      %s93 = int_to_ptr.hbm [resolvable:$true] %s92
      %98 = dma.vmem_to_hbm [thread:$0]  %s91, 256, %s93, [#allocation4], 128, 128, 8
    $region13: #{tpu_custom_call.1} parent=1 // pred_fallthru
      _
    // Predicated region
    $region14: #{tpu_custom_call.1} parent=1 // pred_check
      _
    $region15: #{tpu_custom_call.1} parent=1 // pred_check_branch
      %100 = sbr.rel (0) target = $region17
    $region16: #{tpu_custom_call.1} parent=1 // pred_region
      %102 = dma.done [#allocation4], 256
    $region17: #{tpu_custom_call.1} parent=1 // pred_fallthru
      _
    %103 = vsyncpa [#allocation3], 1
    %104 = vsyncpa [#allocation4], 1

</llo_original>
